<compile_context>
chip_gen: v7x
topology: tpu7x:2x2x1
jax: 0.10.0
libtpu: 0.0.40
codegen_flags: <defaults>
</compile_context>

<pallas_src>
import functools
import math

import jax
import jax.numpy as jnp
from jax import lax
from jax.experimental import pallas as pl
from jax.experimental.pallas import tpu as pltpu


def _round_up(x, m):
    return (x + m - 1) // m * m


def _pad_to(x, target_shape):
    pads = tuple((0, t - s) for s, t in zip(x.shape, target_shape))
    if any(p for _, p in pads):
        x = jnp.pad(x, pads)
    return x


def _attention_kernel(q_ref, k_ref, v_ref, wq_ref, bq_ref, mask_ref,
                      out_ref, attn_ref, *, scale, apply_mask):
    # Q projection for this query tile; fold 1/sqrt(d_k) into Q.
    Q = jnp.dot(q_ref[0], wq_ref[...],
                preferred_element_type=jnp.float32) + bq_ref[...]
    Qb = (Q * scale).astype(jnp.bfloat16)

    # Scores (TQ, Lk_p): contract last dims of Q and K (no K^T materialized).
    s = lax.dot_general(Qb, k_ref[0],
                        dimension_numbers=(((1,), (1,)), ((), ())),
                        preferred_element_type=jnp.float32)

    if apply_mask:  # static: one additive pass masks padded key columns
        s = s + mask_ref[...]

    # Numerically stable softmax over keys.
    m = jnp.max(s, axis=-1, keepdims=True)
    e = jnp.exp(s - m)
    denom = jnp.sum(e, axis=-1, keepdims=True)

    # PV matmul on the unnormalized probabilities; normalize the (TQ, De)
    # result rather than the (TQ, Lk) operand (MXU starts earlier, approx
    # reciprocal runs on the EUP slot, multiply touches TQ*De not TQ*Lk).
    pv = jnp.dot(e.astype(jnp.bfloat16), v_ref[0],
                 preferred_element_type=jnp.float32)
    out_ref[0] = (pv * pl.reciprocal(denom, approx=True)).astype(out_ref.dtype)

    # Returned attention probabilities use the exact reciprocal so rows sum
    # to 1 within the output dtype's precision.
    attn_ref[0] = (e / denom).astype(attn_ref.dtype)


def _physical_vmem_bytes():
    try:
        return int(pltpu.get_tpu_info().vmem_capacity_bytes)
    except Exception:
        return 64 << 20  # conservative (v7x-sized) fallback


def _default_tile_q():
    # v6e/v7x have 256-wide MXUs -> TQ=256 fills the M dimension; v5e's MXU
    # is 128x128, so a larger TQ only raises vreg/VMEM pressure there.
    try:
        kind = jax.devices()[0].device_kind.lower()
    except Exception:
        kind = ""
    return 128 if "v5" in kind else 256


def _vmem_estimate_bytes(tq, lk_p, dq_p, de_p, out_bytes):
    bf, f32 = 2, 4
    est = 0
    est += 2 * tq * dq_p * bf            # q tile (double-buffered)
    est += 2 * lk_p * de_p * bf          # projected-K tile
    est += 2 * lk_p * de_p * bf          # projected-V tile
    est += 2 * dq_p * de_p * bf          # wq
    est += 2 * 8 * de_p * f32            # bq (sublane-padded)
    est += 2 * 8 * lk_p * f32            # key-pad mask row
    est += 2 * tq * de_p * out_bytes     # new_value out tile
    est += 2 * tq * lk_p * out_bytes     # attention out tile
    est += 4 * tq * lk_p * f32           # f32 softmax intermediates (s, e, attn)
    est += 2 * tq * de_p * f32           # Q / PV f32 intermediates
    return est


def attention_layer_forward(query, key, value, params, *, tq=None,
                            out_dtype=jnp.bfloat16):
    """Pallas equivalent of AttentionLayer.forward.

    query : (B, Lq, query_dim)   f32
    key   : (B, Lk, key_dim)     f32
    value : (B, Lk, embed_dim)   f32
    params: dict with pre-transposed weights (in, out) and biases (1, out), f32

    Returns (new_value (B, Lq, embed_dim), attention (B, Lq, Lk)), both in
    `out_dtype` (bf16 by default — an API-level precision choice that halves
    the dominant HBM writeback; pass jnp.float32 for full-precision outputs).
    MXU operands are bf16 with f32 accumulation throughout.
    """
    B, Lq, Dq = query.shape
    _, Lk, _ = key.shape
    _, _, De = value.shape

    # --- K/V projections hoisted out of the kernel (computed once, bf16). ---
    k_proj = (key @ params["wk"] + params["bk"]).astype(jnp.bfloat16)
    v_proj = (value @ params["wv"] + params["bv"]).astype(jnp.bfloat16)

    # Lane-dense padded dims.
    Dq_p = _round_up(Dq, 128)
    De_p = _round_up(De, 128)
    Lk_p = _round_up(Lk, 128)

    # Query tile: generation-aware default, forced to a multiple of 16
    # (sublane alignment for bf16 blocks), reduced if VMEM would overflow.
    if tq is None:
        tq = _default_tile_q()
    TQ = _round_up(min(tq, _round_up(Lq, 16)), 16)

    phys_vmem = _physical_vmem_bytes()
    vmem_cap = (phys_vmem * 4) // 5        # ~20% headroom for Mosaic scratch
    out_bytes = jnp.dtype(out_dtype).itemsize
    while TQ > 16 and _vmem_estimate_bytes(TQ, Lk_p, Dq_p, De_p, out_bytes) > vmem_cap:
        TQ = max(16, TQ // 2)
    Lq_p = _round_up(Lq, TQ)

    # Pad (only when needed) + cast activations/weights to bf16.
    q_p = _pad_to(query, (B, Lq_p, Dq_p)).astype(jnp.bfloat16)
    k_p = _pad_to(k_proj, (B, Lk_p, De_p))
    v_p = _pad_to(v_proj, (B, Lk_p, De_p))
    wq = _pad_to(params["wq"], (Dq_p, De_p)).astype(jnp.bfloat16)
    bq = _pad_to(params["bq"], (1, De_p))                       # stays f32

    apply_mask = Lk_p != Lk
    mask = jnp.where(jnp.arange(Lk_p) < Lk, 0.0, -1e30)
    mask = mask.astype(jnp.float32).reshape(1, Lk_p)

    kernel = functools.partial(
        _attention_kernel,
        scale=1.0 / math.sqrt(float(De)),   # d_k == embed_dim post-projection
        apply_mask=apply_mask)

    grid = (B, Lq_p // TQ)

    in_specs = [
        pl.BlockSpec((1, TQ, Dq_p), lambda b, qi: (b, qi, 0)),    # query tile
        pl.BlockSpec((1, Lk_p, De_p), lambda b, qi: (b, 0, 0)),   # projected K
        pl.BlockSpec((1, Lk_p, De_p), lambda b, qi: (b, 0, 0)),   # projected V
        pl.BlockSpec((Dq_p, De_p), lambda b, qi: (0, 0)),         # wq
        pl.BlockSpec((1, De_p), lambda b, qi: (0, 0)),            # bq
        pl.BlockSpec((1, Lk_p), lambda b, qi: (0, 0)),            # pad mask
    ]
    out_specs = [
        pl.BlockSpec((1, TQ, De_p), lambda b, qi: (b, qi, 0)),    # new_value
        pl.BlockSpec((1, TQ, Lk_p), lambda b, qi: (b, qi, 0)),    # attention
    ]
    out_shapes = (
        jax.ShapeDtypeStruct((B, Lq_p, De_p), out_dtype),
        jax.ShapeDtypeStruct((B, Lq_p, Lk_p), out_dtype),
    )

    est = _vmem_estimate_bytes(TQ, Lk_p, Dq_p, De_p, out_bytes)
    vmem_limit = int(min(max(est + est // 4 + (4 << 20), 16 << 20), vmem_cap))

    out, attn = pl.pallas_call(
        kernel,
        out_shape=out_shapes,
        grid_spec=pltpu.PrefetchScalarGridSpec(
            num_scalar_prefetch=0,
            grid=grid,
            in_specs=in_specs,
            out_specs=out_specs),
        compiler_params=pltpu.CompilerParams(
            # No cross-step state -> both axes are independent; on v7x this
            # lets query tiles shard across both TensorCores even when B==1.
            dimension_semantics=("parallel", "parallel"),
            vmem_limit_bytes=vmem_limit),
    )(q_p, k_p, v_p, wq, bq, mask)

    if Lq_p != Lq or De_p != De:
        out = out[:, :Lq, :De]
    if Lq_p != Lq or Lk_p != Lk:
        attn = attn[:, :Lq, :Lk]
    return out, attn


def init_params(key, embed_dim, key_dim, query_dim):
    """Deterministic parameter init (uniform, like torch.nn.Linear default)."""
    ks = jax.random.split(key, 6)

    def lin(kw, kb, in_dim, out_dim):
        bound = 1.0 / math.sqrt(float(in_dim))
        w = jax.random.uniform(kw, (in_dim, out_dim), jnp.float32, -bound, bound)
        b = jax.random.uniform(kb, (1, out_dim), jnp.float32, -bound, bound)
        return w, b

    wv, bv = lin(ks[0], ks[1], embed_dim, embed_dim)
    wk, bk = lin(ks[2], ks[3], key_dim, embed_dim)
    wq, bq = lin(ks[4], ks[5], query_dim, embed_dim)
    return {"wq": wq, "bq": bq, "wk": wk, "bk": bk, "wv": wv, "bv": bv}


def _reference(query, key, value, params):
    Q = query @ params["wq"] + params["bq"]
    K = key @ params["wk"] + params["bk"]
    V = value @ params["wv"] + params["bv"]
    dk = K.shape[-1]
    s = jnp.einsum("bqd,bkd->bqk", Q, K) / jnp.sqrt(jnp.float32(dk))
    attn = jax.nn.softmax(s, axis=-1)
    return jnp.einsum("bqk,bkd->bqd", attn, V), attn


if __name__ == "__main__":
    # Small deterministic example.
    embed_dim, key_dim, query_dim = 32, 16, 24
    B, Lq, Lk = 2, 8, 8

    root = jax.random.PRNGKey(0)
    k_p, k_q, k_k, k_v = jax.random.split(root, 4)

    params = init_params(k_p, embed_dim, key_dim, query_dim)
    query = jax.random.normal(k_q, (B, Lq, query_dim), jnp.float32)
    key = jax.random.normal(k_k, (B, Lk, key_dim), jnp.float32)
    value = jax.random.normal(k_v, (B, Lk, embed_dim), jnp.float32)

    new_value, attention = attention_layer_forward(query, key, value, params)
    jax.block_until_ready((new_value, attention))

    assert new_value.shape == (B, Lq, embed_dim)
    assert attention.shape == (B, Lq, Lk)

    ref_nv, ref_attn = _reference(query, key, value, params)
    # bf16 MXU operands + bf16 outputs (f32 accumulation) => loose tolerance.
    assert jnp.allclose(new_value.astype(jnp.float32), ref_nv, atol=3e-2, rtol=3e-2)
    assert jnp.allclose(attention.astype(jnp.float32), ref_attn, atol=3e-2, rtol=3e-2)
    # Softmax rows must sum to ~1 over the valid keys.
    assert jnp.allclose(attention.astype(jnp.float32).sum(-1), 1.0, atol=1e-2)

    print("KERNEL_OK")
</pallas_src>

<mosaic_0001>
module attributes {stable_mosaic.version = 11 : i64} {
  func.func @_attention_kernel(%arg0: i32, %arg1: i32, %arg2: memref<1x16x128xbf16, #tpu.memory_space<vmem>>, %arg3: memref<1x128x128xbf16, #tpu.memory_space<vmem>>, %arg4: memref<1x128x128xbf16, #tpu.memory_space<vmem>>, %arg5: memref<128x128xbf16, #tpu.memory_space<vmem>>, %arg6: memref<1x128xf32, #tpu.memory_space<vmem>>, %arg7: memref<1x128xf32, #tpu.memory_space<vmem>>, %arg8: memref<1x16x128xbf16, #tpu.memory_space<vmem>>, %arg9: memref<1x16x128xbf16, #tpu.memory_space<vmem>>) attributes {dimension_semantics = [#tpu.dimension_semantics<parallel>, #tpu.dimension_semantics<parallel>], iteration_bounds = array<i64: 2, 1>, scalar_prefetch = 0 : i64, scratch_operands = 0 : i64, tpu.core_type = #tpu.core_type<tc>, window_params = [{transform_indices = @transform_0, window_bounds = array<i64: 1, 16, 128>}, {transform_indices = @transform_1, window_bounds = array<i64: 1, 128, 128>}, {transform_indices = @transform_2, window_bounds = array<i64: 1, 128, 128>}, {pipeline_mode = #tpu.pipeline_mode<synchronous>, transform_indices = @transform_3, window_bounds = array<i64: 128, 128>}, {pipeline_mode = #tpu.pipeline_mode<synchronous>, transform_indices = @transform_4, window_bounds = array<i64: 1, 128>}, {pipeline_mode = #tpu.pipeline_mode<synchronous>, transform_indices = @transform_5, window_bounds = array<i64: 1, 128>}, {transform_indices = @transform_6, window_bounds = array<i64: 1, 16, 128>}, {transform_indices = @transform_7, window_bounds = array<i64: 1, 16, 128>}]} {
    %c0 = arith.constant 0 : index
    %c0_0 = arith.constant 0 : index
    %c0_1 = arith.constant 0 : index
    %0 = vector.load %arg2[%c0, %c0_0, %c0_1] : memref<1x16x128xbf16, #tpu.memory_space<vmem>>, vector<1x16x128xbf16>
    %1 = vector.shape_cast %0 : vector<1x16x128xbf16> to vector<16x128xbf16>
    %c0_2 = arith.constant 0 : index
    %c0_3 = arith.constant 0 : index
    %2 = vector.load %arg5[%c0_2, %c0_3] : memref<128x128xbf16, #tpu.memory_space<vmem>>, vector<128x128xbf16>
    %cst = arith.constant dense<0.000000e+00> : vector<16x128xf32>
    %3 = tpu.matmul %1, %2, %cst {dimension_numbers = #tpu.dot_dimension_numbers<[1], [0], [0], [1], [0, 0, 1, 1], [], []>} : vector<16x128xbf16>, vector<128x128xbf16>, vector<16x128xf32> -> vector<16x128xf32>
    %c0_4 = arith.constant 0 : index
    %c0_5 = arith.constant 0 : index
    %4 = vector.load %arg6[%c0_4, %c0_5] : memref<1x128xf32, #tpu.memory_space<vmem>>, vector<1x128xf32>
    %5 = vector.broadcast %4 : vector<1x128xf32> to vector<16x128xf32>
    %6 = arith.addf %3, %5 : vector<16x128xf32>
    %cst_6 = arith.constant 0.176776692 : f32
    %7 = vector.broadcast %cst_6 : f32 to vector<16x128xf32>
    %8 = arith.mulf %6, %7 : vector<16x128xf32>
    %9 = arith.truncf %8 : vector<16x128xf32> to vector<16x128xbf16>
    %c0_7 = arith.constant 0 : index
    %c0_8 = arith.constant 0 : index
    %c0_9 = arith.constant 0 : index
    %10 = vector.load %arg3[%c0_7, %c0_8, %c0_9] : memref<1x128x128xbf16, #tpu.memory_space<vmem>>, vector<1x128x128xbf16>
    %11 = vector.shape_cast %10 : vector<1x128x128xbf16> to vector<128x128xbf16>
    %cst_10 = arith.constant dense<0.000000e+00> : vector<16x128xf32>
    %12 = tpu.matmul %9, %11, %cst_10 {dimension_numbers = #tpu.dot_dimension_numbers<[1], [1], [0], [0], [0, 0, 1, 0], [], []>} : vector<16x128xbf16>, vector<128x128xbf16>, vector<16x128xf32> -> vector<16x128xf32>
    %c0_11 = arith.constant 0 : index
    %c0_12 = arith.constant 0 : index
    %13 = vector.load %arg7[%c0_11, %c0_12] : memref<1x128xf32, #tpu.memory_space<vmem>>, vector<1x128xf32>
    %14 = vector.broadcast %13 : vector<1x128xf32> to vector<16x128xf32>
    %15 = arith.addf %12, %14 : vector<16x128xf32>
    %cst_13 = arith.constant dense<0xFF800000> : vector<16xf32>
    %16 = vector.multi_reduction <maximumf>, %15, %cst_13 [1] : vector<16x128xf32> to vector<16xf32>
    %17 = vector.shape_cast %16 : vector<16xf32> to vector<16x1xf32>
    %18 = vector.broadcast %17 : vector<16x1xf32> to vector<16x128xf32>
    %19 = arith.subf %15, %18 : vector<16x128xf32>
    %20 = math.exp %19 : vector<16x128xf32>
    %cst_14 = arith.constant dense<0.000000e+00> : vector<16xf32>
    %21 = vector.multi_reduction <add>, %20, %cst_14 [1] : vector<16x128xf32> to vector<16xf32>
    %22 = vector.shape_cast %21 : vector<16xf32> to vector<16x1xf32>
    %23 = arith.truncf %20 : vector<16x128xf32> to vector<16x128xbf16>
    %c0_15 = arith.constant 0 : index
    %c0_16 = arith.constant 0 : index
    %c0_17 = arith.constant 0 : index
    %24 = vector.load %arg4[%c0_15, %c0_16, %c0_17] : memref<1x128x128xbf16, #tpu.memory_space<vmem>>, vector<1x128x128xbf16>
    %25 = vector.shape_cast %24 : vector<1x128x128xbf16> to vector<128x128xbf16>
    %cst_18 = arith.constant dense<0.000000e+00> : vector<16x128xf32>
    %26 = tpu.matmul %23, %25, %cst_18 {dimension_numbers = #tpu.dot_dimension_numbers<[1], [0], [0], [1], [0, 0, 1, 1], [], []>} : vector<16x128xbf16>, vector<128x128xbf16>, vector<16x128xf32> -> vector<16x128xf32>
    %27 = tpu.reciprocal %22 {approx = true} : vector<16x1xf32> -> vector<16x1xf32>
    %28 = vector.broadcast %27 : vector<16x1xf32> to vector<16x128xf32>
    %29 = arith.mulf %26, %28 : vector<16x128xf32>
    %30 = arith.truncf %29 : vector<16x128xf32> to vector<16x128xbf16>
    %c0_19 = arith.constant 0 : index
    %c0_20 = arith.constant 0 : index
    %c0_21 = arith.constant 0 : index
    %31 = vector.load %arg8[%c0_19, %c0_20, %c0_21] : memref<1x16x128xbf16, #tpu.memory_space<vmem>>, vector<1x16x128xbf16>
    %32 = vector.shape_cast %31 : vector<1x16x128xbf16> to vector<16x128xbf16>
    %33 = vector.shape_cast %30 : vector<16x128xbf16> to vector<1x16x128xbf16>
    tpu.vector_store %arg8[%c0_19, %c0_20, %c0_21], %33 {strides = array<i32>} : memref<1x16x128xbf16, #tpu.memory_space<vmem>>, vector<1x16x128xbf16>,
    %34 = vector.broadcast %22 : vector<16x1xf32> to vector<16x128xf32>
    %35 = arith.divf %20, %34 : vector<16x128xf32>
    %36 = arith.truncf %35 : vector<16x128xf32> to vector<16x128xbf16>
    %c0_22 = arith.constant 0 : index
    %c0_23 = arith.constant 0 : index
    %c0_24 = arith.constant 0 : index
    %37 = vector.load %arg9[%c0_22, %c0_23, %c0_24] : memref<1x16x128xbf16, #tpu.memory_space<vmem>>, vector<1x16x128xbf16>
    %38 = vector.shape_cast %37 : vector<1x16x128xbf16> to vector<16x128xbf16>
    %39 = vector.shape_cast %36 : vector<16x128xbf16> to vector<1x16x128xbf16>
    tpu.vector_store %arg9[%c0_22, %c0_23, %c0_24], %39 {strides = array<i32>} : memref<1x16x128xbf16, #tpu.memory_space<vmem>>, vector<1x16x128xbf16>,
    return
  }
  func.func @transform_0(%arg0: i32, %arg1: i32) -> (i32, i32, i32) {
    %c0_i32 = arith.constant 0 : i32
    %c0_i32_0 = arith.constant 0 : i32
    return %arg0, %arg1, %c0_i32 : i32, i32, i32
  }
  func.func @transform_1(%arg0: i32, %arg1: i32) -> (i32, i32, i32) {
    %c0_i32 = arith.constant 0 : i32
    %c0_i32_0 = arith.constant 0 : i32
    %c0_i32_1 = arith.constant 0 : i32
    return %arg0, %c0_i32, %c0_i32_0 : i32, i32, i32
  }
  func.func @transform_2(%arg0: i32, %arg1: i32) -> (i32, i32, i32) {
    %c0_i32 = arith.constant 0 : i32
    %c0_i32_0 = arith.constant 0 : i32
    %c0_i32_1 = arith.constant 0 : i32
    return %arg0, %c0_i32, %c0_i32_0 : i32, i32, i32
  }
  func.func @transform_3(%arg0: i32, %arg1: i32) -> (i32, i32) {
    %c0_i32 = arith.constant 0 : i32
    %c0_i32_0 = arith.constant 0 : i32
    %c0_i32_1 = arith.constant 0 : i32
    return %c0_i32, %c0_i32_0 : i32, i32
  }
  func.func @transform_4(%arg0: i32, %arg1: i32) -> (i32, i32) {
    %c0_i32 = arith.constant 0 : i32
    %c0_i32_0 = arith.constant 0 : i32
    %c0_i32_1 = arith.constant 0 : i32
    return %c0_i32, %c0_i32_0 : i32, i32
  }
  func.func @transform_5(%arg0: i32, %arg1: i32) -> (i32, i32) {
    %c0_i32 = arith.constant 0 : i32
    %c0_i32_0 = arith.constant 0 : i32
    %c0_i32_1 = arith.constant 0 : i32
    return %c0_i32, %c0_i32_0 : i32, i32
  }
  func.func @transform_6(%arg0: i32, %arg1: i32) -> (i32, i32, i32) {
    %c0_i32 = arith.constant 0 : i32
    %c0_i32_0 = arith.constant 0 : i32
    return %arg0, %arg1, %c0_i32 : i32, i32, i32
  }
  func.func @transform_7(%arg0: i32, %arg1: i32) -> (i32, i32, i32) {
    %c0_i32 = arith.constant 0 : i32
    %c0_i32_0 = arith.constant 0 : i32
    return %arg0, %arg1, %c0_i32 : i32, i32, i32
  }
}

</mosaic_0001>

<llo_original>
// kernel: tpu_custom_call.1
$region0: #{tpu_custom_call.1}
  #allocation0 [shape = 'u32[]', space=smem, size = 0x4, offset = 0x4, fixed_abs, tag = 'smem constant byte address 0x4 - core index']
  #allocation1 [shape = 'u32[144,128]{1,0:T(1,128)}', space=vmem, size = 0x12000, scoped, tag = 'internal scratch']
  %s0 = inlined_call_operand.hbm [shape: bf16[2,16,128], index: 0, kind: input, shape index: {}]
  %s1 = inlined_call_operand.hbm [shape: bf16[2,128,128], index: 1, kind: input, shape index: {}]
  %s2 = inlined_call_operand.hbm [shape: bf16[2,128,128], index: 2, kind: input, shape index: {}]
  %s3 = inlined_call_operand.hbm [shape: bf16[128,128], index: 3, kind: input, shape index: {}]
  %s4 = inlined_call_operand.vmem [shape: f32[1,128], index: 4, kind: input, shape index: {}]
  %s5 = inlined_call_operand.vmem [shape: f32[1,128], index: 5, kind: input, shape index: {}]
  %s6 = inlined_call_operand.hbm [shape: bf16[2,16,128], index: 6, kind: output, shape index: {0}]
  %s7 = inlined_call_operand.hbm [shape: bf16[2,16,128], index: 7, kind: output, shape index: {1}]
  %8 = xla_tuple %s6, %s7
  %s9 = sld [smem:[#allocation0]]
  $region81: #{tpu_custom_call.1} parent=0
    _
  %s11 = ssub.s32 1, %s9
  %s12 = scalar_select 0, %s11, %s9
  $region1: #{tpu_custom_call.1} parent=0
    #allocation2 [shape = 'u8[8192]{0}', space=vmem, size = 0x2000, scoped, tag = 'input window, operand 0']
    #allocation3 [shape = 's32[2]{0}', space=sflag, size = 0x8, scoped, tag = 'scoped memory for tpu_custom_call.1']
    #allocation4 [shape = 's32[2]{0}', space=sflag, size = 0x8, scoped, tag = 'scoped memory for tpu_custom_call.1']
    #allocation5 [shape = 'u8[65536]{0}', space=vmem, size = 0x10000, scoped, tag = 'input window, operand 1']
    #allocation6 [shape = 's32[2]{0}', space=sflag, size = 0x8, scoped, tag = 'scoped memory for tpu_custom_call.1']
    #allocation7 [shape = 'u8[65536]{0}', space=vmem, size = 0x10000, scoped, tag = 'input window, operand 2']
    #allocation8 [shape = 'u8[32768]{0}', space=vmem, size = 0x8000, scoped, tag = 'input window, operand 3, single buffered']
    #allocation9 [shape = 's32[1]{0}', space=sflag, size = 0x4, scoped, tag = 'scoped memory for tpu_custom_call.1']
    #allocation10 [shape = 'u8[8192]{0}', space=vmem, size = 0x2000, scoped, tag = 'output window, operand 0']
    #allocation11 [shape = 'u8[8192]{0}', space=vmem, size = 0x2000, scoped, tag = 'output window, operand 1']
    #allocation12 [shape = 's32[2]{0}', space=sflag, size = 0x8, scoped, tag = 'scoped memory for tpu_custom_call.1']
    %13 = vsyncpa [#allocation3], 0
    %s14 = scalar_lea.sflag [#allocation3], 1
    %15 = vsyncpa %s14, 0
    %16 = vsyncpa [#allocation6], 0
    %s17 = scalar_lea.sflag [#allocation6], 1
    %18 = vsyncpa %s17, 0
    %19 = vsyncpa [#allocation9], 0
    %20 = vsyncpa [#allocation4], 0
    %s21 = scalar_lea.sflag [#allocation4], 1
    %22 = vsyncpa %s21, 0
    %23 = vsyncpa [#allocation12], 0
    %s24 = scalar_lea.sflag [#allocation12], 1
    %25 = vsyncpa %s24, 0
    loop: start=0, step=1, limit=4
    $region2: #{tpu_custom_call.1} parent=1 // loop_pre_header
      _
    $region3: #{tpu_custom_call.1} parent=1 // loop_header
      %s27 = sphi 0, %s31
      %p28 = scmp.ge.s32.totalorder %s27, 4
      %s34 = sphi 0, %s46
      %s35 = sphi 0, %s42
      %s36 = sphi 0, %s34
      %s37 = sphi 0, %s35
      %s38 = sphi 0, %s36
      %s39 = sphi 0, %s37
      %s51 = sphi 0, %s53
      %s54 = sphi 0, %s51
      %s55 = sphi 0, %s54
      %s71 = sphi 0, %s55
      %s77 = sphi 0, %s79
      %s80 = sphi 0, %s77
      %s81 = sphi 0, %s80
      %s97 = sphi 0, %s81
      %s103 = sphi 0, %s105
      %s106 = sphi 0, %s103
      %s107 = sphi 0, %s106
      %s123 = sphi 0, %s107
      %s127 = sphi 0, %s127
      %s129 = sphi 0, %s127
      %s130 = sphi 0, %s129
      %s144 = sphi 0, %s130
      %s148 = sphi 0, %s148
      %s150 = sphi 0, %s148
      %s151 = sphi 0, %s150
      %s165 = sphi 0, %s151
      %s169 = sphi 0, %s169
      %s171 = sphi 0, %s169
      %s172 = sphi 0, %s171
      %s186 = sphi 0, %s172
      %s194 = sphi 0, %s196
      %s197 = sphi 0, %s194
      %s198 = sphi 0, %s197
      %s214 = sphi 0, %s198
      %s222 = sphi 0, %s224
      %s225 = sphi 0, %s222
      %s226 = sphi 0, %s225
      %s242 = sphi 0, %s226
    $region4: #{tpu_custom_call.1} parent=1 // loop_header_branch
      %30 = sbr.rel (%p28) target = $region8
    $region5: #{tpu_custom_call.1} parent=1 // loop_body
      %s32 = ssub.s32 %s27, 1
      %s33 = ssub.s32 %s27, 2
      %s40 = sadd.s32 1, %s35
      %p41 = scmp.ge.s32.totalorder %s40, 1
      %s42 = scalar_select %p41, 0, %s40
      %s43 = sadd.s32 1, %s34
      %s44 = scalar_select %p41, %s43, %s34
      %p45 = scmp.ge.s32.totalorder %s44, 2
      %s46 = scalar_select %p45, 0, %s44
      %s47 = ssub.s32 %s34, %s46
      %s48 = ssub.s32 %s35, %s42
      %s49 = sor.u32 %s47, %s48
      %p50 = scmp.eq.s32.totalorder %s49, 0
      %s52 = sadd.s32 %s51, 1
      %s53 = scalar_select %p50, %s51, %s52
      %p56 = pneg %p50
      %p57 = scmp.eq.s32.totalorder %s27, 1
      %p58 = por %p56, %p57
      %p59 = scmp.ne.s32.totalorder %s51, %s54
      %p60 = scmp.eq.s32.totalorder %s27, 0
      %p61 = por %p59, %p60
      %p62 = scmp.ne.s32.totalorder %s51, %s54
      %p63 = scmp.eq.s32.totalorder %s32, 1
      %p64 = por %p62, %p63
      %p65 = scmp.ne.s32.totalorder %s54, %s55
      %p66 = scmp.eq.s32.totalorder %s32, 0
      %p67 = por %p65, %p66
      %p68 = scmp.ne.s32.totalorder %s54, %s55
      %p69 = scmp.eq.s32.totalorder %s33, 1
      %p70 = por %p68, %p69
      %p72 = scmp.ne.s32.totalorder %s55, %s71
      %p73 = scmp.eq.s32.totalorder %s33, 0
      %p74 = por %p72, %p73
      %s75 = ssub.s32 %s34, %s46
      %p76 = scmp.eq.s32.totalorder %s75, 0
      %s78 = sadd.s32 %s77, 1
      %s79 = scalar_select %p76, %s77, %s78
      %p82 = pneg %p76
      %p83 = scmp.eq.s32.totalorder %s27, 1
      %p84 = por %p82, %p83
      %p85 = scmp.ne.s32.totalorder %s77, %s80
      %p86 = scmp.eq.s32.totalorder %s27, 0
      %p87 = por %p85, %p86
      %p88 = scmp.ne.s32.totalorder %s77, %s80
      %p89 = scmp.eq.s32.totalorder %s32, 1
      %p90 = por %p88, %p89
      %p91 = scmp.ne.s32.totalorder %s80, %s81
      %p92 = scmp.eq.s32.totalorder %s32, 0
      %p93 = por %p91, %p92
      %p94 = scmp.ne.s32.totalorder %s80, %s81
      %p95 = scmp.eq.s32.totalorder %s33, 1
      %p96 = por %p94, %p95
      %p98 = scmp.ne.s32.totalorder %s81, %s97
      %p99 = scmp.eq.s32.totalorder %s33, 0
      %p100 = por %p98, %p99
      %s101 = ssub.s32 %s34, %s46
      %p102 = scmp.eq.s32.totalorder %s101, 0
      %s104 = sadd.s32 %s103, 1
      %s105 = scalar_select %p102, %s103, %s104
      %p108 = pneg %p102
      %p109 = scmp.eq.s32.totalorder %s27, 1
      %p110 = por %p108, %p109
      %p111 = scmp.ne.s32.totalorder %s103, %s106
      %p112 = scmp.eq.s32.totalorder %s27, 0
      %p113 = por %p111, %p112
      %p114 = scmp.ne.s32.totalorder %s103, %s106
      %p115 = scmp.eq.s32.totalorder %s32, 1
      %p116 = por %p114, %p115
      %p117 = scmp.ne.s32.totalorder %s106, %s107
      %p118 = scmp.eq.s32.totalorder %s32, 0
      %p119 = por %p117, %p118
      %p120 = scmp.ne.s32.totalorder %s106, %s107
      %p121 = scmp.eq.s32.totalorder %s33, 1
      %p122 = por %p120, %p121
      %p124 = scmp.ne.s32.totalorder %s107, %s123
      %p125 = scmp.eq.s32.totalorder %s33, 0
      %p126 = por %p124, %p125
      %s128 = sadd.s32 %s127, 1
      %p131 = scmp.eq.s32.totalorder %s27, 1
      %p132 = scmp.ne.s32.totalorder %s127, %s129
      %p133 = scmp.eq.s32.totalorder %s27, 0
      %p134 = por %p132, %p133
      %p135 = scmp.ne.s32.totalorder %s127, %s129
      %p136 = scmp.eq.s32.totalorder %s32, 1
      %p137 = por %p135, %p136
      %p138 = scmp.ne.s32.totalorder %s129, %s130
      %p139 = scmp.eq.s32.totalorder %s32, 0
      %p140 = por %p138, %p139
      %p141 = scmp.ne.s32.totalorder %s129, %s130
      %p142 = scmp.eq.s32.totalorder %s33, 1
      %p143 = por %p141, %p142
      %p145 = scmp.ne.s32.totalorder %s130, %s144
      %p146 = scmp.eq.s32.totalorder %s33, 0
      %p147 = por %p145, %p146
      %s149 = sadd.s32 %s148, 1
      %p152 = scmp.eq.s32.totalorder %s27, 1
      %p153 = scmp.ne.s32.totalorder %s148, %s150
      %p154 = scmp.eq.s32.totalorder %s27, 0
      %p155 = por %p153, %p154
      %p156 = scmp.ne.s32.totalorder %s148, %s150
      %p157 = scmp.eq.s32.totalorder %s32, 1
      %p158 = por %p156, %p157
      %p159 = scmp.ne.s32.totalorder %s150, %s151
      %p160 = scmp.eq.s32.totalorder %s32, 0
      %p161 = por %p159, %p160
      %p162 = scmp.ne.s32.totalorder %s150, %s151
      %p163 = scmp.eq.s32.totalorder %s33, 1
      %p164 = por %p162, %p163
      %p166 = scmp.ne.s32.totalorder %s151, %s165
      %p167 = scmp.eq.s32.totalorder %s33, 0
      %p168 = por %p166, %p167
      %s170 = sadd.s32 %s169, 1
      %p173 = scmp.eq.s32.totalorder %s27, 1
      %p174 = scmp.ne.s32.totalorder %s169, %s171
      %p175 = scmp.eq.s32.totalorder %s27, 0
      %p176 = por %p174, %p175
      %p177 = scmp.ne.s32.totalorder %s169, %s171
      %p178 = scmp.eq.s32.totalorder %s32, 1
      %p179 = por %p177, %p178
      %p180 = scmp.ne.s32.totalorder %s171, %s172
      %p181 = scmp.eq.s32.totalorder %s32, 0
      %p182 = por %p180, %p181
      %p183 = scmp.ne.s32.totalorder %s171, %s172
      %p184 = scmp.eq.s32.totalorder %s33, 1
      %p185 = por %p183, %p184
      %p187 = scmp.ne.s32.totalorder %s172, %s186
      %p188 = scmp.eq.s32.totalorder %s33, 0
      %p189 = por %p187, %p188
      %s190 = ssub.s32 %s34, %s46
      %s191 = ssub.s32 %s35, %s42
      %s192 = sor.u32 %s190, %s191
      %p193 = scmp.eq.s32.totalorder %s192, 0
      %s195 = sadd.s32 %s194, 1
      %s196 = scalar_select %p193, %s194, %s195
      %p199 = pneg %p193
      %p200 = scmp.eq.s32.totalorder %s27, 1
      %p201 = por %p199, %p200
      %p202 = scmp.ne.s32.totalorder %s194, %s197
      %p203 = scmp.eq.s32.totalorder %s27, 0
      %p204 = por %p202, %p203
      %p205 = scmp.ne.s32.totalorder %s194, %s197
      %p206 = scmp.eq.s32.totalorder %s32, 1
      %p207 = por %p205, %p206
      %p208 = scmp.ne.s32.totalorder %s197, %s198
      %p209 = scmp.eq.s32.totalorder %s32, 0
      %p210 = por %p208, %p209
      %p211 = scmp.ne.s32.totalorder %s197, %s198
      %p212 = scmp.eq.s32.totalorder %s33, 1
      %p213 = por %p211, %p212
      %p215 = scmp.ne.s32.totalorder %s198, %s214
      %p216 = scmp.eq.s32.totalorder %s33, 0
      %p217 = por %p215, %p216
      %s218 = ssub.s32 %s34, %s46
      %s219 = ssub.s32 %s35, %s42
      %s220 = sor.u32 %s218, %s219
      %p221 = scmp.eq.s32.totalorder %s220, 0
      %s223 = sadd.s32 %s222, 1
      %s224 = scalar_select %p221, %s222, %s223
      %p227 = pneg %p221
      %p228 = scmp.eq.s32.totalorder %s27, 1
      %p229 = por %p227, %p228
      %p230 = scmp.ne.s32.totalorder %s222, %s225
      %p231 = scmp.eq.s32.totalorder %s27, 0
      %p232 = por %p230, %p231
      %p233 = scmp.ne.s32.totalorder %s222, %s225
      %p234 = scmp.eq.s32.totalorder %s32, 1
      %p235 = por %p233, %p234
      %p236 = scmp.ne.s32.totalorder %s225, %s226
      %p237 = scmp.eq.s32.totalorder %s32, 0
      %p238 = por %p236, %p237
      %p239 = scmp.ne.s32.totalorder %s225, %s226
      %p240 = scmp.eq.s32.totalorder %s33, 1
      %p241 = por %p239, %p240
      %p243 = scmp.ne.s32.totalorder %s226, %s242
      %p244 = scmp.eq.s32.totalorder %s33, 0
      %p245 = por %p243, %p244
      %p246 = scmp.le.s32.totalorder 1, %s27
      %p247 = scmp.lt.s32.totalorder %s27, 3
      %p248 = pnand %p246, %p247
      %p249 = pneg %p248
      // Predicated region
      $region9: #{tpu_custom_call.1} parent=5 // pred_check
        _
      $region10: #{tpu_custom_call.1} parent=5 // pred_check_branch
        %251 = sbr.rel (%p248) target = $region12
      $region11: #{tpu_custom_call.1} parent=5 // pred_region
        %s252 = ssub.s32 %s27, 1
        // Predicated region
        $region13: #{tpu_custom_call.1} parent=11 // pred_check
          %p253 = pneg %p140
        $region14: #{tpu_custom_call.1} parent=11 // pred_check_branch
          %255 = sbr.rel (%p253) target = $region16
        $region15: #{tpu_custom_call.1} parent=11 // pred_region
          %s257 = ssub.s32 1024, 1024
          %258 = vsyncadd [#allocation9], %s257
          %s259 = sshll.u32 [#allocation8], 4
          %s260 = int_to_ptr.vmem [resolvable:$true] %s259
          %265 = dma.hbm_to_vmem [thread:$0]  %s3, 1024, %s260, [#allocation9], 64, 64, 4
        $region16: #{tpu_custom_call.1} parent=11 // pred_fallthru
          _
        // Predicated region
        $region17: #{tpu_custom_call.1} parent=11 // pred_check
          %p266 = pneg %p161
        $region18: #{tpu_custom_call.1} parent=11 // pred_check_branch
          %268 = sbr.rel (%p266) target = $region20
        $region19: #{tpu_custom_call.1} parent=11 // pred_region
          _
        $region20: #{tpu_custom_call.1} parent=11 // pred_fallthru
          _
        // Predicated region
        $region21: #{tpu_custom_call.1} parent=11 // pred_check
          %p269 = pneg %p182
        $region22: #{tpu_custom_call.1} parent=11 // pred_check_branch
          %271 = sbr.rel (%p269) target = $region24
        $region23: #{tpu_custom_call.1} parent=11 // pred_region
          _
        $region24: #{tpu_custom_call.1} parent=11 // pred_fallthru
          _
      $region12: #{tpu_custom_call.1} parent=5 // pred_fallthru
        _
      %p272 = scmp.lt.s32.totalorder %s27, 2
      // Predicated region
      $region25: #{tpu_custom_call.1} parent=5 // pred_check
        %p273 = pneg %p272
      $region26: #{tpu_custom_call.1} parent=5 // pred_check_branch
        %275 = sbr.rel (%p273) target = $region28
      $region27: #{tpu_custom_call.1} parent=5 // pred_region
        // Predicated region
        $region29: #{tpu_custom_call.1} parent=27 // pred_check
          %p276 = pneg %p61
        $region30: #{tpu_custom_call.1} parent=27 // pred_check_branch
          %278 = sbr.rel (%p276) target = $region32
        $region31: #{tpu_custom_call.1} parent=27 // pred_region
          %s279 = sand.u32 %s51, 1
          %s280 = scalar_lea.sflag [#allocation3], %s279
          %s281 = sand.u32 %s51, 1
          %s282 = smul.addr %s281, 8
          %s283 = scalar_lea.vmem [#allocation2], %s282
          %s284 = smul.u32 2, %s35
          %s286 = ssub.s32 128, 128
          %287 = vsyncadd %s280, %s286
          %s288 = smul.addr %s34, 2
          %s289 = sadd.s32 %s284, %s288
          %s290 = smul.addr %s289, 64
          %s291 = scalar_lea.hbm %s0, %s290
          %s292 = sshll.u32 %s283, 4
          %s293 = int_to_ptr.vmem [resolvable:$true] %s292
          %298 = dma.hbm_to_vmem [thread:$0]  %s291, 128, %s293, %s280, 64, 64, 4
        $region32: #{tpu_custom_call.1} parent=27 // pred_fallthru
          _
        // Predicated region
        $region33: #{tpu_custom_call.1} parent=27 // pred_check
          %p299 = pneg %p87
        $region34: #{tpu_custom_call.1} parent=27 // pred_check_branch
          %301 = sbr.rel (%p299) target = $region36
        $region35: #{tpu_custom_call.1} parent=27 // pred_region
          %s302 = sand.u32 %s27, 1
          %s303 = scalar_lea.sflag [#allocation6], %s302
          %s304 = sand.u32 %s77, 1
          %s305 = smul.addr %s304, 64
          %s306 = scalar_lea.vmem [#allocation5], %s305
          %s308 = ssub.s32 1024, 1024
          %309 = vsyncadd %s303, %s308
          %s310 = smul.addr %s34, 16
          %s311 = smul.addr %s310, 64
          %s312 = scalar_lea.hbm %s1, %s311
          %s313 = sshll.u32 %s306, 4
          %s314 = int_to_ptr.vmem [resolvable:$true] %s313
          %319 = dma.hbm_to_vmem [thread:$0]  %s312, 1024, %s314, %s303, 64, 64, 4
        $region36: #{tpu_custom_call.1} parent=27 // pred_fallthru
          _
        // Predicated region
        $region37: #{tpu_custom_call.1} parent=27 // pred_check
          %p320 = pneg %p113
        $region38: #{tpu_custom_call.1} parent=27 // pred_check_branch
          %322 = sbr.rel (%p320) target = $region40
        $region39: #{tpu_custom_call.1} parent=27 // pred_region
          %s323 = sand.u32 %s27, 1
          %s324 = scalar_lea.sflag [#allocation6], %s323
          %s325 = sand.u32 %s103, 1
          %s326 = smul.addr %s325, 64
          %s327 = scalar_lea.vmem [#allocation7], %s326
          %s329 = ssub.s32 1024, 1024
          %330 = vsyncadd %s324, %s329
          %s331 = smul.addr %s34, 16
          %s332 = smul.addr %s331, 64
          %s333 = scalar_lea.hbm %s2, %s332
          %s334 = sshll.u32 %s327, 4
          %s335 = int_to_ptr.vmem [resolvable:$true] %s334
          %340 = dma.hbm_to_vmem [thread:$0]  %s333, 1024, %s335, %s324, 64, 64, 4
        $region40: #{tpu_custom_call.1} parent=27 // pred_fallthru
          _
      $region28: #{tpu_custom_call.1} parent=5 // pred_fallthru
        _
      %p341 = scmp.le.s32.totalorder 1, %s27
      %p342 = scmp.lt.s32.totalorder %s27, 3
      %p343 = pnand %p341, %p342
      %p344 = pneg %p343
      // Predicated region
      $region41: #{tpu_custom_call.1} parent=5 // pred_check
        _
      $region42: #{tpu_custom_call.1} parent=5 // pred_check_branch
        %346 = sbr.rel (%p343) target = $region44
      $region43: #{tpu_custom_call.1} parent=5 // pred_region
        %s347 = ssub.s32 %s27, 1
        %s348 = sand.u32 %s54, 1
        %s349 = scalar_lea.sflag [#allocation3], %s348
        %s350 = sand.u32 %s54, 1
        %s351 = smul.addr %s350, 8
        %s352 = scalar_lea.vmem [#allocation2], %s351
        // Predicated region
        $region45: #{tpu_custom_call.1} parent=43 // pred_check
          %p353 = pneg %p67
        $region46: #{tpu_custom_call.1} parent=43 // pred_check_branch
          %355 = sbr.rel (%p353) target = $region48
        $region47: #{tpu_custom_call.1} parent=43 // pred_region
          %356 = dma.done %s349, 128
        $region48: #{tpu_custom_call.1} parent=43 // pred_fallthru
          _
        %s357 = sand.u32 %s32, 1
        %s358 = scalar_lea.sflag [#allocation6], %s357
        %s359 = sand.u32 %s80, 1
        %s360 = smul.addr %s359, 64
        %s361 = scalar_lea.vmem [#allocation5], %s360
        // Predicated region
        $region49: #{tpu_custom_call.1} parent=43 // pred_check
          %p362 = pneg %p93
        $region50: #{tpu_custom_call.1} parent=43 // pred_check_branch
          %364 = sbr.rel (%p362) target = $region52
        $region51: #{tpu_custom_call.1} parent=43 // pred_region
          %365 = dma.done %s358, 1024
        $region52: #{tpu_custom_call.1} parent=43 // pred_fallthru
          _
        %s366 = sand.u32 %s32, 1
        %s367 = scalar_lea.sflag [#allocation6], %s366
        %s368 = sand.u32 %s106, 1
        %s369 = smul.addr %s368, 64
        %s370 = scalar_lea.vmem [#allocation7], %s369
        // Predicated region
        $region53: #{tpu_custom_call.1} parent=43 // pred_check
          %p371 = pneg %p119
        $region54: #{tpu_custom_call.1} parent=43 // pred_check_branch
          %373 = sbr.rel (%p371) target = $region56
        $region55: #{tpu_custom_call.1} parent=43 // pred_region
          %374 = dma.done %s367, 1024
        $region56: #{tpu_custom_call.1} parent=43 // pred_fallthru
          _
        // Predicated region
        $region57: #{tpu_custom_call.1} parent=43 // pred_check
          %p375 = pneg %p140
        $region58: #{tpu_custom_call.1} parent=43 // pred_check_branch
          %377 = sbr.rel (%p375) target = $region60
        $region59: #{tpu_custom_call.1} parent=43 // pred_region
          %378 = dma.done [#allocation9], 1024
        $region60: #{tpu_custom_call.1} parent=43 // pred_fallthru
          _
        %s379 = sand.u32 %s54, 1
        %s380 = scalar_lea.sflag [#allocation3], %s379
        %s381 = sand.u32 %s54, 1
        %s382 = smul.addr %s381, 8
        %s383 = scalar_lea.vmem [#allocation2], %s382
        %p384 = pneg %p67
        %p385 = pneg %p64
        %s386 = sand.u32 %s32, 1
        %s387 = scalar_lea.sflag [#allocation6], %s386
        %s388 = sand.u32 %s80, 1
        %s389 = smul.addr %s388, 64
        %s390 = scalar_lea.vmem [#allocation5], %s389
        %p391 = pneg %p93
        %p392 = pneg %p90
        %s393 = sand.u32 %s32, 1
        %s394 = scalar_lea.sflag [#allocation6], %s393
        %s395 = sand.u32 %s106, 1
        %s396 = smul.addr %s395, 64
        %s397 = scalar_lea.vmem [#allocation7], %s396
        %p398 = pneg %p119
        %p399 = pneg %p116
        %p400 = pneg %p140
        %p401 = pneg %p137
        %p402 = pneg %p161
        %p403 = pneg %p158
        %p404 = pneg %p182
        %p405 = pneg %p179
        %p406 = pneg %p210
        %p407 = pneg %p207
        %s408 = sand.u32 %s197, 1
        %s409 = scalar_lea.sflag [#allocation4], %s408
        %s410 = sand.u32 %s197, 1
        %s411 = smul.addr %s410, 8
        %s412 = scalar_lea.vmem [#allocation10], %s411
        %p413 = pneg %p238
        %p414 = pneg %p235
        %s415 = sand.u32 %s225, 1
        %s416 = scalar_lea.sflag [#allocation12], %s415
        %s417 = sand.u32 %s225, 1
        %s418 = smul.addr %s417, 8
        %s419 = scalar_lea.vmem [#allocation11], %s418
        %s420 = smul.u32 2, %s37
        %s421 = smul.u32 2, %s37
        %s422 = smul.u32 2, %s37
        %v424 = vld [vmem:[%s352] sm:$0xf]
        %v425 = vld [vmem:[%s352 + $0x4] sm:$0xf]
        %v426 = vld [vmem:[#allocation8] sm:$0xf]
        %v427 = vld [vmem:[#allocation8 + $0x4] sm:$0xf]
        %v428 = vld [vmem:[#allocation8 + $0x8] sm:$0xf]
        %v429 = vld [vmem:[#allocation8 + $0xc] sm:$0xf]
        %v430 = vld [vmem:[#allocation8 + $0x10] sm:$0xf]
        %v431 = vld [vmem:[#allocation8 + $0x14] sm:$0xf]
        %v432 = vld [vmem:[#allocation8 + $0x18] sm:$0xf]
        %v433 = vld [vmem:[#allocation8 + $0x1c] sm:$0xf]
        %v434 = vld [vmem:[#allocation8 + $0x20] sm:$0xf]
        %v435 = vld [vmem:[#allocation8 + $0x24] sm:$0xf]
        %v436 = vld [vmem:[#allocation8 + $0x28] sm:$0xf]
        %v437 = vld [vmem:[#allocation8 + $0x2c] sm:$0xf]
        %v438 = vld [vmem:[#allocation8 + $0x30] sm:$0xf]
        %v439 = vld [vmem:[#allocation8 + $0x34] sm:$0xf]
        %v440 = vld [vmem:[#allocation8 + $0x38] sm:$0xf]
        %v441 = vld [vmem:[#allocation8 + $0x3c] sm:$0xf]
        %v442 = vld [vmem:[%s4] sm:$0x1]
        %v444 = vlaneseq
        %v445 = vshrl.u32 %v444, 7
        %v446 = vsub.s32 0, %v445
        %v447 = vrot.slane %v442, %v446
        %v451 = vunpack.c.l.b16 %v424
        %v452 = vunpack.c.l.b16 %v425
        %v453 = vpack.c.b16 %v452, %v451
        %v471 = vunpack.c.l.b16 %v426
        %v472 = vunpack.c.l.b16 %v427
        %v473 = vunpack.c.l.b16 %v428
        %v474 = vunpack.c.l.b16 %v429
        %v475 = vunpack.c.l.b16 %v430
        %v476 = vunpack.c.l.b16 %v431
        %v477 = vunpack.c.l.b16 %v432
        %v478 = vunpack.c.l.b16 %v433
        %v479 = vunpack.c.l.b16 %v434
        %v480 = vunpack.c.l.b16 %v435
        %v481 = vunpack.c.l.b16 %v436
        %v482 = vunpack.c.l.b16 %v437
        %v483 = vunpack.c.l.b16 %v438
        %v484 = vunpack.c.l.b16 %v439
        %v485 = vunpack.c.l.b16 %v440
        %v486 = vunpack.c.l.b16 %v441
        %v487 = vpack.c.b16 %v472, %v471
        %v488 = vpack.c.b16 %v474, %v473
        %v489 = vpack.c.b16 %v476, %v475
        %v490 = vpack.c.b16 %v478, %v477
        %v491 = vpack.c.b16 %v480, %v479
        %v492 = vpack.c.b16 %v482, %v481
        %v493 = vpack.c.b16 %v484, %v483
        %v494 = vpack.c.b16 %v486, %v485
        %503 = vmatprep.subr.bf16.mxu0 0
        %504 = vmatpush1.bf16.msra.mxu0 %v487
        %505 = vmatprep.subr.bf16.mxu0 0
        %506 = vmatpush1.bf16.msra.mxu0 %v488
        %507 = vmatprep.subr.bf16.mxu0 0
        %508 = vmatpush1.bf16.msra.mxu0 %v489
        %509 = vmatprep.subr.bf16.mxu0 0
        %510 = vmatpush1.bf16.msra.mxu0 %v490
        %511 = vmatprep.subr.bf16.mxu0 0
        %512 = vmatpush1.bf16.msra.mxu0 %v491
        %513 = vmatprep.subr.bf16.mxu0 0
        %514 = vmatpush1.bf16.msra.mxu0 %v492
        %515 = vmatprep.subr.bf16.mxu0 0
        %516 = vmatpush1.bf16.msra.mxu0 %v493
        %517 = vmatprep.subr.bf16.mxu0 0
        %518 = vmatpush1.bf16.msra.mxu0 %v494
        %519 = vmatprep.subr.bf16.mxu0 0
        %520 = vmatpush1.bf16.msra.mxu0 0
        %521 = vmatprep.subr.bf16.mxu0 0
        %522 = vmatpush1.bf16.msra.mxu0 0
        %523 = vmatprep.subr.bf16.mxu0 0
        %524 = vmatpush1.bf16.msra.mxu0 0
        %525 = vmatprep.subr.bf16.mxu0 0
        %526 = vmatpush1.bf16.msra.mxu0 0
        %527 = vmatprep.subr.bf16.mxu0 0
        %528 = vmatpush1.bf16.msra.mxu0 0
        %529 = vmatprep.subr.bf16.mxu0 0
        %530 = vmatpush1.bf16.msra.mxu0 0
        %531 = vmatprep.subr.bf16.mxu0 0
        %532 = vmatpush1.bf16.msra.mxu0 0
        %533 = vmatprep.subr.bf16.mxu0 0
        %534 = vmatpush1.bf16.msra.mxu0 0
        %535 = vmatprep.mubr.bf16.mxu0 0
        %536 = vmatmul.mubr.bf16.gmra.mrb[0].mxu0 %v453
        %v537 = vpop.f32.mrb[0].mxu0
        %v538 = vadd.f32 %v447, %v537
        %v539 = vpop.f32.mrb[0].mxu0
        %v540 = vpop.f32.mrb[0].mxu0
        %v541 = vadd.f32 %v447, %v540
        %v542 = vpop.f32.mrb[0].mxu0
        %543 = vdwg.mxu0
        %v544 = vmul.f32 %v538, 0.17677669
        %v545 = vmul.f32 %v541, 0.17677669
        %v546 = vpack.c.bf16 %v545, %v544
        %v547 = vld [vmem:[%s361] sm:$0xf]
        %v548 = vld [vmem:[%s361 + $0x4] sm:$0xf]
        %v549 = vld [vmem:[%s361 + $0x8] sm:$0xf]
        %v550 = vld [vmem:[%s361 + $0xc] sm:$0xf]
        %v551 = vld [vmem:[%s361 + $0x10] sm:$0xf]
        %v552 = vld [vmem:[%s361 + $0x14] sm:$0xf]
        %v553 = vld [vmem:[%s361 + $0x18] sm:$0xf]
        %v554 = vld [vmem:[%s361 + $0x1c] sm:$0xf]
        %v555 = vld [vmem:[%s361 + $0x20] sm:$0xf]
        %v556 = vld [vmem:[%s361 + $0x24] sm:$0xf]
        %v557 = vld [vmem:[%s361 + $0x28] sm:$0xf]
        %v558 = vld [vmem:[%s361 + $0x2c] sm:$0xf]
        %v559 = vld [vmem:[%s361 + $0x30] sm:$0xf]
        %v560 = vld [vmem:[%s361 + $0x34] sm:$0xf]
        %v561 = vld [vmem:[%s361 + $0x38] sm:$0xf]
        %v562 = vld [vmem:[%s361 + $0x3c] sm:$0xf]
        %v563 = vld [vmem:[%s5] sm:$0x1]
        %v565 = vlaneseq
        %v566 = vshrl.u32 %v565, 7
        %v567 = vsub.s32 0, %v566
        %v568 = vrot.slane %v563, %v567
        %v586 = vunpack.c.l.b16 %v547
        %v587 = vunpack.c.l.b16 %v548
        %v588 = vunpack.c.l.b16 %v549
        %v589 = vunpack.c.l.b16 %v550
        %v590 = vunpack.c.l.b16 %v551
        %v591 = vunpack.c.l.b16 %v552
        %v592 = vunpack.c.l.b16 %v553
        %v593 = vunpack.c.l.b16 %v554
        %v594 = vunpack.c.l.b16 %v555
        %v595 = vunpack.c.l.b16 %v556
        %v596 = vunpack.c.l.b16 %v557
        %v597 = vunpack.c.l.b16 %v558
        %v598 = vunpack.c.l.b16 %v559
        %v599 = vunpack.c.l.b16 %v560
        %v600 = vunpack.c.l.b16 %v561
        %v601 = vunpack.c.l.b16 %v562
        %v602 = vpack.c.b16 %v587, %v586
        %v603 = vpack.c.b16 %v589, %v588
        %v604 = vpack.c.b16 %v591, %v590
        %v605 = vpack.c.b16 %v593, %v592
        %v606 = vpack.c.b16 %v595, %v594
        %v607 = vpack.c.b16 %v597, %v596
        %v608 = vpack.c.b16 %v599, %v598
        %v609 = vpack.c.b16 %v601, %v600
        %618 = vmatprep.subr.bf16.mxu0 0
        %619 = vmatpush1.bf16.xpose.msra.mxu0 %v602
        %620 = vmatprep.subr.bf16.mxu0 0
        %621 = vmatpush1.bf16.xpose.msra.mxu0 %v603
        %622 = vmatprep.subr.bf16.mxu0 0
        %623 = vmatpush1.bf16.xpose.msra.mxu0 %v604
        %624 = vmatprep.subr.bf16.mxu0 0
        %625 = vmatpush1.bf16.xpose.msra.mxu0 %v605
        %626 = vmatprep.subr.bf16.mxu0 0
        %627 = vmatpush1.bf16.xpose.msra.mxu0 %v606
        %628 = vmatprep.subr.bf16.mxu0 0
        %629 = vmatpush1.bf16.xpose.msra.mxu0 %v607
        %630 = vmatprep.subr.bf16.mxu0 0
        %631 = vmatpush1.bf16.xpose.msra.mxu0 %v608
        %632 = vmatprep.subr.bf16.mxu0 0
        %633 = vmatpush1.bf16.xpose.msra.mxu0 %v609
        %634 = vmatprep.subr.bf16.mxu0 0
        %635 = vmatpush1.bf16.xpose.msra.mxu0 0
        %636 = vmatprep.subr.bf16.mxu0 0
        %637 = vmatpush1.bf16.xpose.msra.mxu0 0
        %638 = vmatprep.subr.bf16.mxu0 0
        %639 = vmatpush1.bf16.xpose.msra.mxu0 0
        %640 = vmatprep.subr.bf16.mxu0 0
        %641 = vmatpush1.bf16.xpose.msra.mxu0 0
        %642 = vmatprep.subr.bf16.mxu0 0
        %643 = vmatpush1.bf16.xpose.msra.mxu0 0
        %644 = vmatprep.subr.bf16.mxu0 0
        %645 = vmatpush1.bf16.xpose.msra.mxu0 0
        %646 = vmatprep.subr.bf16.mxu0 0
        %647 = vmatpush1.bf16.xpose.msra.mxu0 0
        %648 = vmatprep.subr.bf16.mxu0 0
        %649 = vmatpush1.bf16.xpose.msra.mxu0 0
        %650 = vmatprep.mubr.bf16.mxu0 0
        %651 = vmatmul.mubr.bf16.gmra.mrb[0].mxu0 %v546
        %v652 = vpop.f32.mrb[0].mxu0
        %v653 = vadd.f32 %v568, %v652
        %v654 = vpop.f32.mrb[0].mxu0
        %v655 = vpop.f32.mrb[0].mxu0
        %v656 = vadd.f32 %v568, %v655
        %v657 = vpop.f32.mrb[0].mxu0
        %658 = vdwg.mxu0
        %659 = vmax.xlane.f32.xlu0 %v653
        %v660 = vpop.xlane.xlu0 %659
        %661 = vmax.xlane.f32.xlu0 %v656
        %v662 = vpop.xlane.xlu0 %661
        %v663 = vsub.f32 %v653, %v660
        %v664 = vsub.f32 %v656, %v662
        %v665 = vmul.f32 %v663, 1.442695
        %v666 = vpow.pop %v665
        %v667 = vmul.f32 %v664, 1.442695
        %v668 = vpow.pop %v667
        %669 = vadd.xlane.f32.xlu0 %v666
        %v670 = vpop.xlane.xlu0 %669
        %671 = vadd.xlane.f32.xlu0 %v668
        %v672 = vpop.xlane.xlu0 %671
        %v673 = vpack.c.bf16 %v668, %v666
        %v674 = vld [vmem:[%s370] sm:$0xf]
        %v675 = vld [vmem:[%s370 + $0x4] sm:$0xf]
        %v676 = vld [vmem:[%s370 + $0x8] sm:$0xf]
        %v677 = vld [vmem:[%s370 + $0xc] sm:$0xf]
        %v678 = vld [vmem:[%s370 + $0x10] sm:$0xf]
        %v679 = vld [vmem:[%s370 + $0x14] sm:$0xf]
        %v680 = vld [vmem:[%s370 + $0x18] sm:$0xf]
        %v681 = vld [vmem:[%s370 + $0x1c] sm:$0xf]
        %v682 = vld [vmem:[%s370 + $0x20] sm:$0xf]
        %v683 = vld [vmem:[%s370 + $0x24] sm:$0xf]
        %v684 = vld [vmem:[%s370 + $0x28] sm:$0xf]
        %v685 = vld [vmem:[%s370 + $0x2c] sm:$0xf]
        %v686 = vld [vmem:[%s370 + $0x30] sm:$0xf]
        %v687 = vld [vmem:[%s370 + $0x34] sm:$0xf]
        %v688 = vld [vmem:[%s370 + $0x38] sm:$0xf]
        %v689 = vld [vmem:[%s370 + $0x3c] sm:$0xf]
        %v706 = vunpack.c.l.b16 %v674
        %v707 = vunpack.c.l.b16 %v675
        %v708 = vunpack.c.l.b16 %v676
        %v709 = vunpack.c.l.b16 %v677
        %v710 = vunpack.c.l.b16 %v678
        %v711 = vunpack.c.l.b16 %v679
        %v712 = vunpack.c.l.b16 %v680
        %v713 = vunpack.c.l.b16 %v681
        %v714 = vunpack.c.l.b16 %v682
        %v715 = vunpack.c.l.b16 %v683
        %v716 = vunpack.c.l.b16 %v684
        %v717 = vunpack.c.l.b16 %v685
        %v718 = vunpack.c.l.b16 %v686
        %v719 = vunpack.c.l.b16 %v687
        %v720 = vunpack.c.l.b16 %v688
        %v721 = vunpack.c.l.b16 %v689
        %v722 = vpack.c.b16 %v707, %v706
        %v723 = vpack.c.b16 %v709, %v708
        %v724 = vpack.c.b16 %v711, %v710
        %v725 = vpack.c.b16 %v713, %v712
        %v726 = vpack.c.b16 %v715, %v714
        %v727 = vpack.c.b16 %v717, %v716
        %v728 = vpack.c.b16 %v719, %v718
        %v729 = vpack.c.b16 %v721, %v720
        %738 = vmatprep.subr.bf16.mxu0 0
        %739 = vmatpush1.bf16.msra.mxu0 %v722
        %740 = vmatprep.subr.bf16.mxu0 0
        %741 = vmatpush1.bf16.msra.mxu0 %v723
        %742 = vmatprep.subr.bf16.mxu0 0
        %743 = vmatpush1.bf16.msra.mxu0 %v724
        %744 = vmatprep.subr.bf16.mxu0 0
        %745 = vmatpush1.bf16.msra.mxu0 %v725
        %746 = vmatprep.subr.bf16.mxu0 0
        %747 = vmatpush1.bf16.msra.mxu0 %v726
        %748 = vmatprep.subr.bf16.mxu0 0
        %749 = vmatpush1.bf16.msra.mxu0 %v727
        %750 = vmatprep.subr.bf16.mxu0 0
        %751 = vmatpush1.bf16.msra.mxu0 %v728
        %752 = vmatprep.subr.bf16.mxu0 0
        %753 = vmatpush1.bf16.msra.mxu0 %v729
        %754 = vmatprep.subr.bf16.mxu0 0
        %755 = vmatpush1.bf16.msra.mxu0 0
        %756 = vmatprep.subr.bf16.mxu0 0
        %757 = vmatpush1.bf16.msra.mxu0 0
        %758 = vmatprep.subr.bf16.mxu0 0
        %759 = vmatpush1.bf16.msra.mxu0 0
        %760 = vmatprep.subr.bf16.mxu0 0
        %761 = vmatpush1.bf16.msra.mxu0 0
        %762 = vmatprep.subr.bf16.mxu0 0
        %763 = vmatpush1.bf16.msra.mxu0 0
        %764 = vmatprep.subr.bf16.mxu0 0
        %765 = vmatpush1.bf16.msra.mxu0 0
        %766 = vmatprep.subr.bf16.mxu0 0
        %767 = vmatpush1.bf16.msra.mxu0 0
        %768 = vmatprep.subr.bf16.mxu0 0
        %769 = vmatpush1.bf16.msra.mxu0 0
        %770 = vmatprep.mubr.bf16.mxu0 0
        %771 = vmatmul.mubr.bf16.gmra.mrb[0].mxu0 %v673
        %v772 = vpop.f32.mrb[0].mxu0
        %v773 = vadd.f32 0.0, %v772
        %v774 = vpop.f32.mrb[0].mxu0
        %v775 = vpop.f32.mrb[0].mxu0
        %v776 = vadd.f32 0.0, %v775
        %v777 = vpop.f32.mrb[0].mxu0
        %778 = vdwg.mxu0
        %v779 = vrcp.pop %v670
        %v780 = vrcp.pop %v672
        %v781 = vmul.f32 %v773, %v779
        %v782 = vmul.f32 %v776, %v780
        %v783 = vpack.c.bf16 %v782, %v781
        %v785 = vunpack.c.l.b16 %v783
        %v786 = vunpack.c.h.b16 %v783
        %v787 = vpack.c.b16 %v785, %v785
        %v788 = vpack.c.b16 %v786, %v786
        %791 = vst [vmem:[%s412] sm:$0xf] %v787
        %792 = vst [vmem:[%s412 + $0x4] sm:$0xf] %v788
        %v793 = vrcp.pop %v670
        %v794 = vmul.f32 %v666, %v793
        %v795 = vrcp.pop %v672
        %v796 = vmul.f32 %v668, %v795
        %v797 = vpack.c.bf16 %v796, %v794
        %v799 = vunpack.c.l.b16 %v797
        %v800 = vunpack.c.h.b16 %v797
        %v801 = vpack.c.b16 %v799, %v799
        %v802 = vpack.c.b16 %v800, %v800
        %805 = vst [vmem:[%s419] sm:$0xf] %v801
        %806 = vst [vmem:[%s419 + $0x4] sm:$0xf] %v802
        %s807 = sand.u32 %s197, 1
        %s808 = scalar_lea.sflag [#allocation4], %s807
        %s809 = sand.u32 %s197, 1
        %s810 = smul.addr %s809, 8
        %s811 = scalar_lea.vmem [#allocation10], %s810
        %s812 = sand.u32 %s225, 1
        %s813 = scalar_lea.sflag [#allocation12], %s812
        %s814 = sand.u32 %s225, 1
        %s815 = smul.addr %s814, 8
        %s816 = scalar_lea.vmem [#allocation11], %s815
        // Predicated region
        $region61: #{tpu_custom_call.1} parent=43 // pred_check
          %p817 = pneg %p207
        $region62: #{tpu_custom_call.1} parent=43 // pred_check_branch
          %819 = sbr.rel (%p817) target = $region64
        $region63: #{tpu_custom_call.1} parent=43 // pred_region
          %s820 = smul.u32 2, %s37
          %s822 = ssub.s32 128, 128
          %823 = vsyncadd %s808, %s822
          %s824 = smul.addr %s36, 2
          %s825 = sadd.s32 %s820, %s824
          %s826 = smul.addr %s825, 64
          %s827 = scalar_lea.hbm %s6, %s826
          %s828 = sshll.u32 %s811, 4
          %s829 = int_to_ptr.vmem [resolvable:$true] %s828
          %834 = dma.vmem_to_hbm [thread:$0]  %s829, 128, %s827, %s808, 64, 64, 4
        $region64: #{tpu_custom_call.1} parent=43 // pred_fallthru
          _
        // Predicated region
        $region65: #{tpu_custom_call.1} parent=43 // pred_check
          %p835 = pneg %p235
        $region66: #{tpu_custom_call.1} parent=43 // pred_check_branch
          %837 = sbr.rel (%p835) target = $region68
        $region67: #{tpu_custom_call.1} parent=43 // pred_region
          %s838 = smul.u32 2, %s37
          %s840 = ssub.s32 128, 128
          %841 = vsyncadd %s813, %s840
          %s842 = smul.addr %s36, 2
          %s843 = sadd.s32 %s838, %s842
          %s844 = smul.addr %s843, 64
          %s845 = scalar_lea.hbm %s7, %s844
          %s846 = sshll.u32 %s816, 4
          %s847 = int_to_ptr.vmem [resolvable:$true] %s846
          %852 = dma.vmem_to_hbm [thread:$0]  %s847, 128, %s845, %s813, 64, 64, 4
        $region68: #{tpu_custom_call.1} parent=43 // pred_fallthru
          _
      $region44: #{tpu_custom_call.1} parent=5 // pred_fallthru
        _
      %p853 = scmp.le.s32.totalorder 2, %s27
      // Predicated region
      $region69: #{tpu_custom_call.1} parent=5 // pred_check
        %p854 = pneg %p853
      $region70: #{tpu_custom_call.1} parent=5 // pred_check_branch
        %856 = sbr.rel (%p854) target = $region72
      $region71: #{tpu_custom_call.1} parent=5 // pred_region
        %s857 = ssub.s32 %s27, 2
        // Predicated region
        $region73: #{tpu_custom_call.1} parent=71 // pred_check
          %p858 = pneg %p213
        $region74: #{tpu_custom_call.1} parent=71 // pred_check_branch
          %860 = sbr.rel (%p858) target = $region76
        $region75: #{tpu_custom_call.1} parent=71 // pred_region
          %s861 = sand.u32 %s198, 1
          %s862 = scalar_lea.sflag [#allocation4], %s861
          %s863 = sand.u32 %s198, 1
          %s864 = smul.addr %s863, 8
          %s865 = scalar_lea.vmem [#allocation10], %s864
          %866 = dma.done %s862, 128
        $region76: #{tpu_custom_call.1} parent=71 // pred_fallthru
          _
        // Predicated region
        $region77: #{tpu_custom_call.1} parent=71 // pred_check
          %p867 = pneg %p241
        $region78: #{tpu_custom_call.1} parent=71 // pred_check_branch
          %869 = sbr.rel (%p867) target = $region80
        $region79: #{tpu_custom_call.1} parent=71 // pred_region
          %s870 = sand.u32 %s226, 1
          %s871 = scalar_lea.sflag [#allocation12], %s870
          %s872 = sand.u32 %s226, 1
          %s873 = smul.addr %s872, 8
          %s874 = scalar_lea.vmem [#allocation11], %s873
          %875 = dma.done %s871, 128
        $region80: #{tpu_custom_call.1} parent=71 // pred_fallthru
          _
      $region72: #{tpu_custom_call.1} parent=5 // pred_fallthru
        _
    $region6: #{tpu_custom_call.1} parent=1 // loop_footer
      %s31 = sadd.s32 1, %s27
    $region7: #{tpu_custom_call.1} parent=1 // loop_footer_branch
      %26 = sbr.rel target = $region3
    $region8: #{tpu_custom_call.1} parent=1 // loop_exit
      _
    %876 = vsyncpa [#allocation3], 1
    %s877 = scalar_lea.sflag [#allocation3], 1
    %878 = vsyncpa %s877, 1
    %879 = vsyncpa [#allocation6], 1
    %s880 = scalar_lea.sflag [#allocation6], 1
    %881 = vsyncpa %s880, 1
    %882 = vsyncpa [#allocation9], 1
    %883 = vsyncpa [#allocation4], 1
    %s884 = scalar_lea.sflag [#allocation4], 1
    %885 = vsyncpa %s884, 1
    %886 = vsyncpa [#allocation12], 1
    %s887 = scalar_lea.sflag [#allocation12], 1
    %888 = vsyncpa %s887, 1

</llo_original>
